<compile_context>
chip_gen: v6e
topology: v6e:2x2x1
jax: 0.10.0
libtpu: 0.0.40
codegen_flags: <defaults>
</compile_context>

<pallas_src>
import jax
import jax.numpy as jnp
from jax import lax
from jax.experimental import pallas as pl
from jax.experimental.pallas import tpu as pltpu


def projection_head_kernel(x_ref, w1_ref, gamma_ref, beta_ref,
                           w2_ref, b2_ref, o_ref):
    # ---- fc1 on the MXU: bf16 operands, f32 accumulation ----
    xb = x_ref[...].astype(jnp.bfloat16)                  # VPU cast, free slot
    h = jnp.dot(xb, w1_ref[...], preferred_element_type=jnp.float32)  # [B, D_h] f32
    # fc1 bias intentionally omitted: a per-feature constant is exactly
    # cancelled by the train-mode BN batch-mean subtraction.

    B = h.shape[0]
    inv_b = jnp.float32(1.0 / B)

    # ---- BatchNorm1d (train mode: biased batch stats, eps=1e-5), fused ----
    hh = h * h
    if B >= 128:
        # Cross-sublane reduction via an MXU ones-row matmul (XLU relief).
        ones = jnp.ones((1, B), jnp.float32)
        s1 = jnp.dot(ones, h, preferred_element_type=jnp.float32)
        s2 = jnp.dot(ones, hh, preferred_element_type=jnp.float32)
    else:
        s1 = jnp.sum(h, axis=0, keepdims=True)
        s2 = jnp.sum(hh, axis=0, keepdims=True)

    mean = s1 * inv_b
    var = s2 * inv_b - mean * mean                         # biased var (PyTorch BN train)
    scale = gamma_ref[...] * lax.rsqrt(var + 1e-5)         # EUP rsqrt
    shift = beta_ref[...] - mean * scale
    a = jnp.maximum(h * scale + shift, 0.0)                # single FMA + ReLU

    # ---- fc2 (this block's output columns): bf16 operands, f32 acc ----
    out = jnp.dot(a.astype(jnp.bfloat16), w2_ref[...],
                  preferred_element_type=jnp.float32)
    out = out + b2_ref[...]
    o_ref[...] = out.astype(o_ref.dtype)


def projection_head(x, w1_t, gamma, beta, w2_t, b2, *, out_dtype=jnp.float32):
    """x: [B, D_in] f32.
    w1_t: [D_in, D_h]  pre-transposed, pre-cast to bf16 at init.
    w2_t: [D_h, D_out] pre-transposed, pre-cast to bf16 at init.
    gamma/beta: [D_h] f32 (BN affine).  b2: [D_out] f32.
    fc1's bias is NOT an argument — it cancels under train-mode BN."""
    B, d_in = x.shape
    d_in_w, d_h = w1_t.shape
    d_h2, d_out = w2_t.shape
    assert d_in_w == d_in and d_h2 == d_h

    # fc2 output-column tile.  Keep a single block (no fc1/BN recompute) unless
    # the per-block VMEM footprint would be large, then tile at 256/128.
    single_block_bytes = 2 * (d_h * d_out * 2 + B * d_out * 4)
    if single_block_bytes <= (8 << 20) or (d_out % 256 and d_out % 128):
        tn = d_out
    elif d_out % 256 == 0:
        tn = 256
    else:
        tn = 128
    grid_n = d_out // tn

    gamma_2d = gamma.reshape(1, d_h).astype(jnp.float32)
    beta_2d = beta.reshape(1, d_h).astype(jnp.float32)
    b2_2d = b2.reshape(1, d_out).astype(jnp.float32)

    in_specs = [
        pl.BlockSpec((B, d_in), lambda j: (0, 0)),      # x      (resident)
        pl.BlockSpec((d_in, d_h), lambda j: (0, 0)),    # w1_t   (resident)
        pl.BlockSpec((1, d_h), lambda j: (0, 0)),       # gamma  (resident)
        pl.BlockSpec((1, d_h), lambda j: (0, 0)),       # beta   (resident)
        pl.BlockSpec((d_h, tn), lambda j: (0, j)),      # w2_t column block
        pl.BlockSpec((1, tn), lambda j: (0, j)),        # b2 column block
    ]
    out_spec = pl.BlockSpec((B, tn), lambda j: (0, j))

    # Advisory cost estimate (fc1+BN are recomputed per column block).
    itemsize = jnp.dtype(x.dtype).itemsize
    flops = 2 * B * d_in * d_h * grid_n + 2 * B * d_h * d_out
    bytes_accessed = (B * d_in * itemsize
                      + d_in * d_h * 2
                      + d_h * d_out * 2
                      + (2 * d_h + d_out) * 4
                      + B * d_out * jnp.dtype(out_dtype).itemsize)
    cost = pl.CostEstimate(flops=flops,
                           transcendentals=d_h * grid_n,
                           bytes_accessed=bytes_accessed)

    # VMEM budget: resident operands + double-buffered column blocks + f32
    # intermediates + headroom; clamped so it also fits v7x (64 MiB physical).
    blocked = 2 * (d_h * tn * 2 + tn * 4 + B * tn * 4)
    resident = B * d_in * itemsize + d_in * d_h * 2 + 2 * d_h * 4
    interm = 4 * B * d_h * 4
    vmem_limit = int(min(max(blocked + resident + interm + (4 << 20), 16 << 20),
                         48 << 20))

    return pl.pallas_call(
        projection_head_kernel,
        out_shape=jax.ShapeDtypeStruct((B, d_out), out_dtype),
        grid_spec=pltpu.PrefetchScalarGridSpec(
            num_scalar_prefetch=0,
            grid=(grid_n,),
            in_specs=in_specs,
            out_specs=out_spec,
        ),
        compiler_params=pltpu.CompilerParams(
            dimension_semantics=("parallel",),
            vmem_limit_bytes=vmem_limit),
        cost_estimate=cost,
    )(x, w1_t, gamma_2d, beta_2d, w2_t, b2_2d)


def reference(x, w1, b1, gamma, beta, w2, b2):
    """Pure-JAX f32 reference mirroring the PyTorch module in train mode
    (includes fc1's bias, which the kernel drops because it cancels)."""
    h = jnp.dot(x, w1.T, preferred_element_type=jnp.float32) + b1
    mean = h.mean(axis=0, keepdims=True)
    var = ((h - mean) ** 2).mean(axis=0, keepdims=True)
    h = (h - mean) * lax.rsqrt(var + 1e-5) * gamma + beta
    h = jnp.maximum(h, 0.0)
    return jnp.dot(h, w2.T, preferred_element_type=jnp.float32) + b2


if __name__ == "__main__":
    key = jax.random.PRNGKey(0)
    B, input_dim, output_dim = 8, 32, 128

    k = jax.random.split(key, 6)
    x = jax.random.normal(k[0], (B, input_dim), dtype=jnp.float32)

    # Deterministic synthetic parameters (PyTorch-like uniform init ranges).
    bound1 = 1.0 / (input_dim ** 0.5)
    w1 = jax.random.uniform(k[1], (output_dim, input_dim), jnp.float32,
                            -bound1, bound1)
    b1 = jax.random.uniform(k[2], (output_dim,), jnp.float32, -bound1, bound1)

    gamma = jnp.ones((output_dim,), jnp.float32)
    beta = jnp.zeros((output_dim,), jnp.float32)

    bound2 = 1.0 / (output_dim ** 0.5)
    w2 = jax.random.uniform(k[3], (output_dim, output_dim), jnp.float32,
                            -bound2, bound2)
    b2 = jax.random.uniform(k[4], (output_dim,), jnp.float32, -bound2, bound2)

    # "Init-time" parameter prep (done ONCE, not per call): pre-transpose to
    # [in, out] and pre-cast MXU operands to bf16.  b1 is dropped on purpose.
    w1_t = jnp.transpose(w1).astype(jnp.bfloat16)     # [D_in, D_h]
    w2_t = jnp.transpose(w2).astype(jnp.bfloat16)     # [D_h, D_out]

    out = projection_head(x, w1_t, gamma, beta, w2_t, b2)
    out = jax.block_until_ready(out)

    ref = reference(x, w1, b1, gamma, beta, w2, b2)
    assert out.shape == (B, output_dim)
    # Tolerance reflects bf16 MXU operands in the kernel vs. an f32 reference.
    assert jnp.allclose(out, ref, atol=5e-2, rtol=5e-2), (
        f"mismatch vs reference (max abs err {jnp.max(jnp.abs(out - ref))})")

    print("KERNEL_OK")
</pallas_src>

<mosaic_0001>
module attributes {stable_mosaic.version = 11 : i64} {
  func.func @projection_head_kernel(%arg0: i32, %arg1: memref<8x32xf32, #tpu.memory_space<vmem>>, %arg2: memref<32x128xbf16, #tpu.memory_space<vmem>>, %arg3: memref<1x128xf32, #tpu.memory_space<vmem>>, %arg4: memref<1x128xf32, #tpu.memory_space<vmem>>, %arg5: memref<128x128xbf16, #tpu.memory_space<vmem>>, %arg6: memref<1x128xf32, #tpu.memory_space<vmem>>, %arg7: memref<8x128xf32, #tpu.memory_space<vmem>>) attributes {dimension_semantics = [#tpu.dimension_semantics<parallel>], iteration_bounds = array<i64: 1>, scalar_prefetch = 0 : i64, scratch_operands = 0 : i64, tpu.core_type = #tpu.core_type<tc>, window_params = [{pipeline_mode = #tpu.pipeline_mode<synchronous>, transform_indices = @transform_0, window_bounds = array<i64: 8, 32>}, {pipeline_mode = #tpu.pipeline_mode<synchronous>, transform_indices = @transform_1, window_bounds = array<i64: 32, 128>}, {pipeline_mode = #tpu.pipeline_mode<synchronous>, transform_indices = @transform_2, window_bounds = array<i64: 1, 128>}, {pipeline_mode = #tpu.pipeline_mode<synchronous>, transform_indices = @transform_3, window_bounds = array<i64: 1, 128>}, {transform_indices = @transform_4, window_bounds = array<i64: 128, 128>}, {transform_indices = @transform_5, window_bounds = array<i64: 1, 128>}, {transform_indices = @transform_6, window_bounds = array<i64: 8, 128>}]} {
    %c0 = arith.constant 0 : index
    %c0_0 = arith.constant 0 : index
    %0 = vector.load %arg1[%c0, %c0_0] : memref<8x32xf32, #tpu.memory_space<vmem>>, vector<8x32xf32>
    %1 = arith.truncf %0 : vector<8x32xf32> to vector<8x32xbf16>
    %c0_1 = arith.constant 0 : index
    %c0_2 = arith.constant 0 : index
    %2 = vector.load %arg2[%c0_1, %c0_2] : memref<32x128xbf16, #tpu.memory_space<vmem>>, vector<32x128xbf16>
    %cst = arith.constant dense<0.000000e+00> : vector<8x128xf32>
    %3 = tpu.matmul %1, %2, %cst {dimension_numbers = #tpu.dot_dimension_numbers<[1], [0], [0], [1], [0, 0, 1, 1], [], []>} : vector<8x32xbf16>, vector<32x128xbf16>, vector<8x128xf32> -> vector<8x128xf32>
    %4 = arith.mulf %3, %3 : vector<8x128xf32>
    %cst_3 = arith.constant dense<0.000000e+00> : vector<128xf32>
    %5 = vector.multi_reduction <add>, %3, %cst_3 [0] : vector<8x128xf32> to vector<128xf32>
    %6 = vector.shape_cast %5 : vector<128xf32> to vector<1x128xf32>
    %cst_4 = arith.constant dense<0.000000e+00> : vector<128xf32>
    %7 = vector.multi_reduction <add>, %4, %cst_4 [0] : vector<8x128xf32> to vector<128xf32>
    %8 = vector.shape_cast %7 : vector<128xf32> to vector<1x128xf32>
    %cst_5 = arith.constant 1.250000e-01 : f32
    %9 = vector.broadcast %cst_5 : f32 to vector<1x128xf32>
    %10 = arith.mulf %6, %9 : vector<1x128xf32>
    %cst_6 = arith.constant 1.250000e-01 : f32
    %11 = vector.broadcast %cst_6 : f32 to vector<1x128xf32>
    %12 = arith.mulf %8, %11 : vector<1x128xf32>
    %13 = arith.mulf %10, %10 : vector<1x128xf32>
    %14 = arith.subf %12, %13 : vector<1x128xf32>
    %c0_7 = arith.constant 0 : index
    %c0_8 = arith.constant 0 : index
    %15 = vector.load %arg3[%c0_7, %c0_8] : memref<1x128xf32, #tpu.memory_space<vmem>>, vector<1x128xf32>
    %cst_9 = arith.constant 9.99999974E-6 : f32
    %16 = vector.broadcast %cst_9 : f32 to vector<1x128xf32>
    %17 = arith.addf %14, %16 : vector<1x128xf32>
    %18 = math.rsqrt %17 : vector<1x128xf32>
    %19 = arith.mulf %15, %18 : vector<1x128xf32>
    %c0_10 = arith.constant 0 : index
    %c0_11 = arith.constant 0 : index
    %20 = vector.load %arg4[%c0_10, %c0_11] : memref<1x128xf32, #tpu.memory_space<vmem>>, vector<1x128xf32>
    %21 = arith.mulf %10, %19 : vector<1x128xf32>
    %22 = arith.subf %20, %21 : vector<1x128xf32>
    %23 = vector.broadcast %19 : vector<1x128xf32> to vector<8x128xf32>
    %24 = arith.mulf %3, %23 : vector<8x128xf32>
    %25 = vector.broadcast %22 : vector<1x128xf32> to vector<8x128xf32>
    %26 = arith.addf %24, %25 : vector<8x128xf32>
    %cst_12 = arith.constant 0.000000e+00 : f32
    %27 = vector.broadcast %cst_12 : f32 to vector<8x128xf32>
    %28 = arith.maximumf %26, %27 : vector<8x128xf32>
    %29 = arith.truncf %28 : vector<8x128xf32> to vector<8x128xbf16>
    %c0_13 = arith.constant 0 : index
    %c0_14 = arith.constant 0 : index
    %30 = vector.load %arg5[%c0_13, %c0_14] : memref<128x128xbf16, #tpu.memory_space<vmem>>, vector<128x128xbf16>
    %cst_15 = arith.constant dense<0.000000e+00> : vector<8x128xf32>
    %31 = tpu.matmul %29, %30, %cst_15 {dimension_numbers = #tpu.dot_dimension_numbers<[1], [0], [0], [1], [0, 0, 1, 1], [], []>} : vector<8x128xbf16>, vector<128x128xbf16>, vector<8x128xf32> -> vector<8x128xf32>
    %c0_16 = arith.constant 0 : index
    %c0_17 = arith.constant 0 : index
    %32 = vector.load %arg6[%c0_16, %c0_17] : memref<1x128xf32, #tpu.memory_space<vmem>>, vector<1x128xf32>
    %33 = vector.broadcast %32 : vector<1x128xf32> to vector<8x128xf32>
    %34 = arith.addf %31, %33 : vector<8x128xf32>
    %c0_18 = arith.constant 0 : index
    %c0_19 = arith.constant 0 : index
    %35 = vector.load %arg7[%c0_18, %c0_19] : memref<8x128xf32, #tpu.memory_space<vmem>>, vector<8x128xf32>
    tpu.vector_store %arg7[%c0_18, %c0_19], %34 {strides = array<i32>} : memref<8x128xf32, #tpu.memory_space<vmem>>, vector<8x128xf32>,
    return
  }
  func.func @transform_0(%arg0: i32) -> (i32, i32) {
    %c0_i32 = arith.constant 0 : i32
    %c0_i32_0 = arith.constant 0 : i32
    %c0_i32_1 = arith.constant 0 : i32
    return %c0_i32, %c0_i32_0 : i32, i32
  }
  func.func @transform_1(%arg0: i32) -> (i32, i32) {
    %c0_i32 = arith.constant 0 : i32
    %c0_i32_0 = arith.constant 0 : i32
    %c0_i32_1 = arith.constant 0 : i32
    return %c0_i32, %c0_i32_0 : i32, i32
  }
  func.func @transform_2(%arg0: i32) -> (i32, i32) {
    %c0_i32 = arith.constant 0 : i32
    %c0_i32_0 = arith.constant 0 : i32
    %c0_i32_1 = arith.constant 0 : i32
    return %c0_i32, %c0_i32_0 : i32, i32
  }
  func.func @transform_3(%arg0: i32) -> (i32, i32) {
    %c0_i32 = arith.constant 0 : i32
    %c0_i32_0 = arith.constant 0 : i32
    %c0_i32_1 = arith.constant 0 : i32
    return %c0_i32, %c0_i32_0 : i32, i32
  }
  func.func @transform_4(%arg0: i32) -> (i32, i32) {
    %c0_i32 = arith.constant 0 : i32
    %c0_i32_0 = arith.constant 0 : i32
    return %c0_i32, %arg0 : i32, i32
  }
  func.func @transform_5(%arg0: i32) -> (i32, i32) {
    %c0_i32 = arith.constant 0 : i32
    %c0_i32_0 = arith.constant 0 : i32
    return %c0_i32, %arg0 : i32, i32
  }
  func.func @transform_6(%arg0: i32) -> (i32, i32) {
    %c0_i32 = arith.constant 0 : i32
    %c0_i32_0 = arith.constant 0 : i32
    return %c0_i32, %arg0 : i32, i32
  }
}

</mosaic_0001>

<llo_original>
// kernel: tpu_custom_call.1
$region0: #{tpu_custom_call.1}
  #allocation0 [shape = 'u32[]', space=smem, size = 0x4, offset = 0x4, fixed_abs, tag = 'smem constant byte address 0x4 - core index']
  #allocation1 [shape = 'u32[144,128]{1,0:T(1,128)}', space=vmem, size = 0x12000, scoped, tag = 'internal scratch']
  %s0 = inlined_call_operand.hbm [shape: f32[8,32], index: 0, kind: input, shape index: {}]
  %s1 = inlined_call_operand.hbm [shape: bf16[32,128], index: 1, kind: input, shape index: {}]
  %s2 = inlined_call_operand.vmem [shape: f32[1,128], index: 2, kind: input, shape index: {}]
  %s3 = inlined_call_operand.vmem [shape: f32[1,128], index: 3, kind: input, shape index: {}]
  %s4 = inlined_call_operand.hbm [shape: bf16[128,128], index: 4, kind: input, shape index: {}]
  %s5 = inlined_call_operand.vmem [shape: f32[1,128], index: 5, kind: input, shape index: {}]
  %s6 = inlined_call_operand.hbm [shape: f32[8,128], index: 6, kind: output, shape index: {}]
  %s7 = sld [smem:[#allocation0]]
  $region46: #{tpu_custom_call.1} parent=0
    _
  %s9 = ssub.s32 1, %s7
  %s10 = scalar_select 0, %s9, %s7
  $region1: #{tpu_custom_call.1} parent=0
    #allocation2 [shape = 'u8[4096]{0}', space=vmem, size = 0x1000, scoped, tag = 'input window, operand 0, single buffered']
    #allocation3 [shape = 's32[1]{0}', space=sflag, size = 0x4, scoped, tag = 'scoped memory for tpu_custom_call.1']
    #allocation4 [shape = 's32[1]{0}', space=sflag, size = 0x4, scoped, tag = 'scoped memory for tpu_custom_call.1']
    #allocation5 [shape = 'u8[8192]{0}', space=vmem, size = 0x2000, scoped, tag = 'input window, operand 1, single buffered']
    #allocation6 [shape = 's32[1]{0}', space=sflag, size = 0x4, scoped, tag = 'scoped memory for tpu_custom_call.1']
    #allocation7 [shape = 'u8[32768]{0}', space=vmem, size = 0x8000, scoped, tag = 'input window, operand 4, single buffered']
    #allocation8 [shape = 'u8[4096]{0}', space=vmem, size = 0x1000, scoped, tag = 'output window, operand 0, single buffered']
    %11 = vsyncpa [#allocation3], 0
    %12 = vsyncpa [#allocation6], 0
    %13 = vsyncpa [#allocation4], 0
    // Predicated region
    $region2: #{tpu_custom_call.1} parent=1 // pred_check
      _
    $region3: #{tpu_custom_call.1} parent=1 // pred_check_branch
      %15 = sbr.rel (0) target = $region5
    $region4: #{tpu_custom_call.1} parent=1 // pred_region
      %s17 = ssub.s32 128, 128
      %18 = vsyncadd [#allocation3], %s17
      %s20 = sshll.u32 [#allocation2], 4
      %s21 = int_to_ptr.vmem [resolvable:$true] %s20
      %23 = dma.hbm_to_vmem [thread:$0]  %s0, 128, %s21, [#allocation3]
    $region5: #{tpu_custom_call.1} parent=1 // pred_fallthru
      _
    // Predicated region
    $region6: #{tpu_custom_call.1} parent=1 // pred_check
      _
    $region7: #{tpu_custom_call.1} parent=1 // pred_check_branch
      %25 = sbr.rel (0) target = $region9
    $region8: #{tpu_custom_call.1} parent=1 // pred_region
      %s27 = ssub.s32 256, 256
      %28 = vsyncadd [#allocation6], %s27
      %s29 = sshll.u32 [#allocation5], 4
      %s30 = int_to_ptr.vmem [resolvable:$true] %s29
      %35 = dma.hbm_to_vmem [thread:$0]  %s1, 256, %s30, [#allocation6], 64, 64, 4
    $region9: #{tpu_custom_call.1} parent=1 // pred_fallthru
      _
    // Predicated region
    $region10: #{tpu_custom_call.1} parent=1 // pred_check
      _
    $region11: #{tpu_custom_call.1} parent=1 // pred_check_branch
      %37 = sbr.rel (0) target = $region13
    $region12: #{tpu_custom_call.1} parent=1 // pred_region
      _
    $region13: #{tpu_custom_call.1} parent=1 // pred_fallthru
      _
    // Predicated region
    $region14: #{tpu_custom_call.1} parent=1 // pred_check
      _
    $region15: #{tpu_custom_call.1} parent=1 // pred_check_branch
      %39 = sbr.rel (0) target = $region17
    $region16: #{tpu_custom_call.1} parent=1 // pred_region
      _
    $region17: #{tpu_custom_call.1} parent=1 // pred_fallthru
      _
    // Predicated region
    $region18: #{tpu_custom_call.1} parent=1 // pred_check
      _
    $region19: #{tpu_custom_call.1} parent=1 // pred_check_branch
      %41 = sbr.rel (0) target = $region21
    $region20: #{tpu_custom_call.1} parent=1 // pred_region
      %s43 = ssub.s32 1024, 1024
      %44 = vsyncadd [#allocation6], %s43
      %s45 = sshll.u32 [#allocation7], 4
      %s46 = int_to_ptr.vmem [resolvable:$true] %s45
      %51 = dma.hbm_to_vmem [thread:$0]  %s4, 1024, %s46, [#allocation6], 64, 64, 4
    $region21: #{tpu_custom_call.1} parent=1 // pred_fallthru
      _
    // Predicated region
    $region22: #{tpu_custom_call.1} parent=1 // pred_check
      _
    $region23: #{tpu_custom_call.1} parent=1 // pred_check_branch
      %53 = sbr.rel (0) target = $region25
    $region24: #{tpu_custom_call.1} parent=1 // pred_region
      _
    $region25: #{tpu_custom_call.1} parent=1 // pred_fallthru
      _
    // Predicated region
    $region26: #{tpu_custom_call.1} parent=1 // pred_check
      _
    $region27: #{tpu_custom_call.1} parent=1 // pred_check_branch
      %55 = sbr.rel (0) target = $region29
    $region28: #{tpu_custom_call.1} parent=1 // pred_region
      %56 = dma.done [#allocation3], 128
    $region29: #{tpu_custom_call.1} parent=1 // pred_fallthru
      _
    // Predicated region
    $region30: #{tpu_custom_call.1} parent=1 // pred_check
      _
    $region31: #{tpu_custom_call.1} parent=1 // pred_check_branch
      %58 = sbr.rel (0) target = $region33
    $region32: #{tpu_custom_call.1} parent=1 // pred_region
      %59 = dma.done [#allocation6], 256
    $region33: #{tpu_custom_call.1} parent=1 // pred_fallthru
      _
    // Predicated region
    $region34: #{tpu_custom_call.1} parent=1 // pred_check
      _
    $region35: #{tpu_custom_call.1} parent=1 // pred_check_branch
      %61 = sbr.rel (0) target = $region37
    $region36: #{tpu_custom_call.1} parent=1 // pred_region
      %62 = dma.done [#allocation6], 1024
    $region37: #{tpu_custom_call.1} parent=1 // pred_fallthru
      _
    %v64 = vld [vmem:[#allocation2] sm:$0xff]
    %v65 = vpack.c.bf16 %v64, %v64
    %v66 = vld [vmem:[#allocation5] sm:$0xf]
    %v67 = vld [vmem:[#allocation5 + $0x4] sm:$0xf]
    %v68 = vld [vmem:[#allocation5 + $0x8] sm:$0xf]
    %v69 = vld [vmem:[#allocation5 + $0xc] sm:$0xf]
    %v74 = vunpack.c.l.b16 %v66
    %v75 = vunpack.c.l.b16 %v67
    %v76 = vunpack.c.l.b16 %v68
    %v77 = vunpack.c.l.b16 %v69
    %v78 = vpack.c.b16 %v75, %v74
    %v79 = vpack.c.b16 %v77, %v76
    %vm82 = vcmask 261120
    %v84 = vsel %vm82, %v65, 0
    %86 = vmatprep.subr.bf16.mxu0 0
    %87 = vmatpush1.bf16.msra.mxu0 0
    %88 = vmatprep.subr.bf16.mxu0 0
    %89 = vmatpush1.bf16.msra.mxu0 0
    %90 = vmatprep.subr.bf16.mxu0 0
    %91 = vmatpush1.bf16.msra.mxu0 0
    %92 = vmatprep.subr.bf16.mxu0 0
    %93 = vmatpush1.bf16.msra.mxu0 0
    %94 = vmatprep.subr.bf16.mxu0 0
    %95 = vmatpush1.bf16.msra.mxu0 0
    %96 = vmatprep.subr.bf16.mxu0 0
    %97 = vmatpush1.bf16.msra.mxu0 0
    %98 = vmatprep.subr.bf16.mxu0 0
    %99 = vmatpush1.bf16.msra.mxu0 %v79
    %100 = vmatprep.subr.bf16.mxu0 0
    %101 = vmatpush1.bf16.msra.mxu0 %v78
    %102 = vmatprep.subr.bf16.mxu0 0
    %103 = vmatpush2.bf16.msra.mxu0 0
    %104 = vmatprep.subr.bf16.mxu0 0
    %105 = vmatpush2.bf16.msra.mxu0 0
    %106 = vmatprep.subr.bf16.mxu0 0
    %107 = vmatpush2.bf16.msra.mxu0 0
    %108 = vmatprep.subr.bf16.mxu0 0
    %109 = vmatpush2.bf16.msra.mxu0 0
    %110 = vmatprep.subr.bf16.mxu0 0
    %111 = vmatpush2.bf16.msra.mxu0 0
    %112 = vmatprep.subr.bf16.mxu0 0
    %113 = vmatpush2.bf16.msra.mxu0 0
    %114 = vmatprep.subr.bf16.mxu0 0
    %115 = vmatpush2.bf16.msra.mxu0 0
    %116 = vmatprep.subr.bf16.mxu0 0
    %117 = vmatpush2.bf16.msra.mxu0 0
    %118 = vmatprep.mubr.bf16.mxu0 0
    %119 = vmatmul.mubr.bf16.gmra.mxu0 %v84
    %v120 = vpop.f32.mrf.mxu0
    %v121 = vadd.f32 0.0, %v120
    %v122 = vpop.f32.mrf.mxu0
    %v123 = vpop.f32.mrf.mxu0
    %v124 = vpop.f32.mrf.mxu0
    %125 = vdwg.mxu0
    %v126 = vmul.f32 %v121, %v121
    %v127 = vrot.slane %v121, 4
    %v128 = vadd.f32 %v121, %v127
    %v129 = vrot.slane %v128, 2
    %v130 = vadd.f32 %v128, %v129
    %v131 = vrot.slane %v130, 1
    %v132 = vadd.f32 %v130, %v131
    %v133 = vrot.slane %v126, 4
    %v134 = vadd.f32 %v126, %v133
    %v135 = vrot.slane %v134, 2
    %v136 = vadd.f32 %v134, %v135
    %v137 = vrot.slane %v136, 1
    %v138 = vadd.f32 %v136, %v137
    %v139 = vmul.f32 %v132, 0.125
    %v140 = vmul.f32 %v138, 0.125
    %v141 = vmul.f32 %v139, %v139
    %v142 = vsub.f32 %v140, %v141
    %v143 = vld [vmem:[%s2] sm:$0x1]
    %v144 = vadd.f32 %v142, 1e-05
    %v145 = vrsqrt.pop %v144
    %v146 = vmul.f32 %v143, %v145
    %v147 = vld [vmem:[%s3] sm:$0x1]
    %v148 = vmul.f32 %v139, %v146
    %v149 = vsub.f32 %v147, %v148
    %v151 = vlaneseq
    %v152 = vshrl.u32 %v151, 7
    %v153 = vsub.s32 0, %v152
    %v154 = vrot.slane %v146, %v153
    %v156 = vmul.f32 %v121, %v154
    %v158 = vlaneseq
    %v159 = vshrl.u32 %v158, 7
    %v160 = vsub.s32 0, %v159
    %v161 = vrot.slane %v149, %v160
    %v163 = vadd.f32 %v156, %v161
    %v164 = vmax.f32 %v163, 0.0
    %v165 = vpack.c.bf16 %v164, %v164
    %v166 = vld [vmem:[#allocation7] sm:$0xf]
    %v167 = vld [vmem:[#allocation7 + $0x4] sm:$0xf]
    %v168 = vld [vmem:[#allocation7 + $0x8] sm:$0xf]
    %v169 = vld [vmem:[#allocation7 + $0xc] sm:$0xf]
    %v170 = vld [vmem:[#allocation7 + $0x10] sm:$0xf]
    %v171 = vld [vmem:[#allocation7 + $0x14] sm:$0xf]
    %v172 = vld [vmem:[#allocation7 + $0x18] sm:$0xf]
    %v173 = vld [vmem:[#allocation7 + $0x1c] sm:$0xf]
    %v174 = vld [vmem:[#allocation7 + $0x20] sm:$0xf]
    %v175 = vld [vmem:[#allocation7 + $0x24] sm:$0xf]
    %v176 = vld [vmem:[#allocation7 + $0x28] sm:$0xf]
    %v177 = vld [vmem:[#allocation7 + $0x2c] sm:$0xf]
    %v178 = vld [vmem:[#allocation7 + $0x30] sm:$0xf]
    %v179 = vld [vmem:[#allocation7 + $0x34] sm:$0xf]
    %v180 = vld [vmem:[#allocation7 + $0x38] sm:$0xf]
    %v181 = vld [vmem:[#allocation7 + $0x3c] sm:$0xf]
    %v182 = vld [vmem:[%s5] sm:$0x1]
    %v184 = vlaneseq
    %v185 = vshrl.u32 %v184, 7
    %v186 = vsub.s32 0, %v185
    %v187 = vrot.slane %v182, %v186
    %v205 = vunpack.c.l.b16 %v166
    %v206 = vunpack.c.l.b16 %v167
    %v207 = vunpack.c.l.b16 %v168
    %v208 = vunpack.c.l.b16 %v169
    %v209 = vunpack.c.l.b16 %v170
    %v210 = vunpack.c.l.b16 %v171
    %v211 = vunpack.c.l.b16 %v172
    %v212 = vunpack.c.l.b16 %v173
    %v213 = vunpack.c.l.b16 %v174
    %v214 = vunpack.c.l.b16 %v175
    %v215 = vunpack.c.l.b16 %v176
    %v216 = vunpack.c.l.b16 %v177
    %v217 = vunpack.c.l.b16 %v178
    %v218 = vunpack.c.l.b16 %v179
    %v219 = vunpack.c.l.b16 %v180
    %v220 = vunpack.c.l.b16 %v181
    %v221 = vpack.c.b16 %v206, %v205
    %v222 = vpack.c.b16 %v208, %v207
    %v223 = vpack.c.b16 %v210, %v209
    %v224 = vpack.c.b16 %v212, %v211
    %v225 = vpack.c.b16 %v214, %v213
    %v226 = vpack.c.b16 %v216, %v215
    %v227 = vpack.c.b16 %v218, %v217
    %v228 = vpack.c.b16 %v220, %v219
    %237 = vmatprep.subr.bf16.mxu0 0
    %238 = vmatpush1.bf16.msra.mxu0 %v228
    %239 = vmatprep.subr.bf16.mxu0 0
    %240 = vmatpush1.bf16.msra.mxu0 %v227
    %241 = vmatprep.subr.bf16.mxu0 0
    %242 = vmatpush1.bf16.msra.mxu0 %v226
    %243 = vmatprep.subr.bf16.mxu0 0
    %244 = vmatpush1.bf16.msra.mxu0 %v225
    %245 = vmatprep.subr.bf16.mxu0 0
    %246 = vmatpush1.bf16.msra.mxu0 %v224
    %247 = vmatprep.subr.bf16.mxu0 0
    %248 = vmatpush1.bf16.msra.mxu0 %v223
    %249 = vmatprep.subr.bf16.mxu0 0
    %250 = vmatpush1.bf16.msra.mxu0 %v222
    %251 = vmatprep.subr.bf16.mxu0 0
    %252 = vmatpush1.bf16.msra.mxu0 %v221
    %253 = vmatprep.subr.bf16.mxu0 0
    %254 = vmatpush2.bf16.msra.mxu0 0
    %255 = vmatprep.subr.bf16.mxu0 0
    %256 = vmatpush2.bf16.msra.mxu0 0
    %257 = vmatprep.subr.bf16.mxu0 0
    %258 = vmatpush2.bf16.msra.mxu0 0
    %259 = vmatprep.subr.bf16.mxu0 0
    %260 = vmatpush2.bf16.msra.mxu0 0
    %261 = vmatprep.subr.bf16.mxu0 0
    %262 = vmatpush2.bf16.msra.mxu0 0
    %263 = vmatprep.subr.bf16.mxu0 0
    %264 = vmatpush2.bf16.msra.mxu0 0
    %265 = vmatprep.subr.bf16.mxu0 0
    %266 = vmatpush2.bf16.msra.mxu0 0
    %267 = vmatprep.subr.bf16.mxu0 0
    %268 = vmatpush2.bf16.msra.mxu0 0
    %269 = vmatprep.mubr.bf16.mxu0 0
    %270 = vmatmul.mubr.bf16.gmra.mxu0 %v165
    %v271 = vpop.f32.mrf.mxu0
    %v272 = vadd.f32 %v187, %v271
    %v273 = vpop.f32.mrf.mxu0
    %v274 = vpop.f32.mrf.mxu0
    %v275 = vpop.f32.mrf.mxu0
    %276 = vdwg.mxu0
    %277 = vst [vmem:[#allocation8] sm:$0xff] %v272
    // Predicated region
    $region38: #{tpu_custom_call.1} parent=1 // pred_check
      _
    $region39: #{tpu_custom_call.1} parent=1 // pred_check_branch
      %279 = sbr.rel (0) target = $region41
    $region40: #{tpu_custom_call.1} parent=1 // pred_region
      %s281 = ssub.s32 128, 128
      %282 = vsyncadd [#allocation4], %s281
      %s284 = sshll.u32 [#allocation8], 4
      %s285 = int_to_ptr.vmem [resolvable:$true] %s284
      %287 = dma.vmem_to_hbm [thread:$0]  %s285, 128, %s6, [#allocation4]
    $region41: #{tpu_custom_call.1} parent=1 // pred_fallthru
      _
    // Predicated region
    $region42: #{tpu_custom_call.1} parent=1 // pred_check
      _
    $region43: #{tpu_custom_call.1} parent=1 // pred_check_branch
      %289 = sbr.rel (0) target = $region45
    $region44: #{tpu_custom_call.1} parent=1 // pred_region
      %290 = dma.done [#allocation4], 128
    $region45: #{tpu_custom_call.1} parent=1 // pred_fallthru
      _
    %291 = vsyncpa [#allocation3], 1
    %292 = vsyncpa [#allocation6], 1
    %293 = vsyncpa [#allocation4], 1

</llo_original>
